<compile_context>
chip_gen: v7x
topology: tpu7x:2x2x1
jax: 0.10.0
libtpu: 0.0.40
codegen_flags: <defaults>
</compile_context>

<pallas_src>
import functools

import jax
import jax.numpy as jnp
from jax.experimental import pallas as pl
from jax.experimental.pallas import tpu as pltpu


def _round_up(a: int, b: int) -> int:
    return ((a + b - 1) // b) * b


def _cdiv(a: int, b: int) -> int:
    return (a + b - 1) // b


def _label_smoothing_kernel(x_ref, t_ref, o_ref, *, confidence, smoothing, n_classes):
    # x_ref: (TB, C) logits, t_ref: (TB, 1) int32 targets,
    # o_ref: (TB, 1) f32 per-example loss.  Partial-last-block OOB rows are
    # clipped by Pallas on output writeback, so their garbage never lands in HBM.
    x = x_ref[...].astype(jnp.float32)                  # f32 math in-kernel
    t = t_ref[...]                                      # (TB, 1) int32

    # Lane reductions of x / exp(x - m); no materialized logprobs / true_dist.
    m = jnp.max(x, axis=-1, keepdims=True)                                  # (TB, 1)
    sum_x = jnp.sum(x, axis=-1, keepdims=True)                              # (TB, 1)
    lse = jnp.log(jnp.sum(jnp.exp(x - m), axis=-1, keepdims=True))          # (TB, 1)

    # (1, C) iota broadcast against (TB, 1) targets -> no (TB, C) int32 temp.
    cls_ids = jax.lax.broadcasted_iota(jnp.int32, (1, x.shape[-1]), 1)
    x_t = jnp.sum(jnp.where(cls_ids == t, x, 0.0), axis=-1, keepdims=True)  # (TB, 1)

    smooth_val = smoothing / (n_classes - 1)
    delta = confidence - smooth_val

    # sum(logprobs) = sum_x - C*(m + lse) ;  logprobs[target] = x_t - m - lse
    sum_logp = sum_x - n_classes * (m + lse)
    logp_t = x_t - (m + lse)
    o_ref[...] = -(smooth_val * sum_logp + delta * logp_t)


def label_smoothing_loss(x, target, classes, smoothing=0.1, *, block_rows=None):
    """x: (B, C) float (f32 or bf16) logits, target: (B,) int class ids -> scalar f32 loss."""
    confidence = 1.0 - smoothing
    B, C = x.shape
    assert C == classes

    itemsize = jnp.dtype(x.dtype).itemsize
    # Sublane multiple for the batch tile (8 for 32-bit, 16 for bf16, 32 for 8-bit).
    mult = 8 if itemsize >= 4 else (16 if itemsize == 2 else 32)

    # Size the batch tile from the *compute* footprint, not just input bytes:
    #   per row: 2 * C * itemsize (double-buffered input DMA)
    #          + ~3 * C * 4       (live f32 temps: upcast x, exp(x-m), mask-select)
    # Steady-state budget ~24 MiB keeps well inside v7x's 64 MiB VMEM.
    bytes_per_row = 2 * C * itemsize + 3 * C * 4
    budget = 24 * 1024 * 1024
    tb = budget // max(1, bytes_per_row)
    tb = max(mult, (tb // mult) * mult)
    tb = min(tb, 8192, _round_up(B, mult))   # cap lifted for small-C / large-B
    if block_rows is not None:
        tb = max(mult, min(tb, _round_up(block_rows, mult)))
    elif B >= 2 * mult and _cdiv(B, tb) == 1:
        # v7x megacore: make sure the "parallel" batch axis has >= 2 blocks.
        tb = max(mult, _round_up(_cdiv(B, 2), mult))

    num_blocks = _cdiv(B, tb)

    # No jnp.pad of the logits: ragged last blocks handled by partial-block
    # clipping.  Targets are only reshaped (no copy of the big array).
    t2d = target.astype(jnp.int32).reshape(B, 1)

    kernel = functools.partial(
        _label_smoothing_kernel,
        confidence=confidence,
        smoothing=smoothing,
        n_classes=C,
    )

    per_ex = pl.pallas_call(
        kernel,
        out_shape=jax.ShapeDtypeStruct((B, 1), jnp.float32),
        grid_spec=pltpu.PrefetchScalarGridSpec(
            num_scalar_prefetch=0,
            grid=(num_blocks,),
            in_specs=[
                pl.BlockSpec((tb, C), lambda i: (i, 0)),   # logits tile
                pl.BlockSpec((tb, 1), lambda i: (i, 0)),   # targets column
            ],
            out_specs=pl.BlockSpec((tb, 1), lambda i: (i, 0)),
        ),
        compiler_params=pltpu.CompilerParams(
            dimension_semantics=("parallel",),              # megacore sharding
            vmem_limit_bytes=48 * 1024 * 1024,              # > 16/32 MiB scoped defaults,
        ),                                                  # < v7x's 64 MiB physical
    )(x, t2d)

    # Output writes are only B*4 bytes (negligible vs B*C*itemsize input reads);
    # final mean over the TRUE batch size in JAX.
    # TODO(synk): emit per-block (1,1) partial sums instead of per-example rows
    # once scalar-sized output blocks are guaranteed to lower on all targets.
    return jnp.sum(per_ex[:, 0]) / B


if __name__ == "__main__":
    key = jax.random.PRNGKey(0)
    kx, kt = jax.random.split(key)

    def ref_loss(x, target, classes, smoothing=0.1):
        logp = jax.nn.log_softmax(x.astype(jnp.float32), axis=-1)
        smooth = smoothing / (classes - 1)
        b = x.shape[0]
        true_dist = jnp.full((b, classes), smooth, jnp.float32)
        true_dist = true_dist.at[jnp.arange(b), target].set(1.0 - smoothing)
        return jnp.mean(jnp.sum(-true_dist * logp, axis=-1))

    # 1) Small shape matching the module: batch=8, classes=32, f32 logits.
    B, C = 8, 32
    x = jax.random.normal(kx, (B, C), dtype=jnp.float32)
    target = jax.random.randint(kt, (B,), 0, C, dtype=jnp.int32)
    loss = jax.block_until_ready(label_smoothing_loss(x, target, classes=C, smoothing=0.1))
    ref = ref_loss(x, target, C, 0.1)
    assert jnp.allclose(loss, ref, atol=1e-5, rtol=1e-5), (loss, ref)

    # 2) Non-multiple batch + forced small block -> multi-block "parallel" grid
    #    with a ragged (clipped) last block, no pad copy of the logits.
    B2, C2 = 37, 96
    kx2, kt2 = jax.random.split(jax.random.PRNGKey(0))
    x2 = jax.random.normal(kx2, (B2, C2), dtype=jnp.float32)
    t2 = jax.random.randint(kt2, (B2,), 0, C2, dtype=jnp.int32)
    loss2 = jax.block_until_ready(
        label_smoothing_loss(x2, t2, classes=C2, smoothing=0.1, block_rows=16))
    ref2 = ref_loss(x2, t2, C2, 0.1)
    assert jnp.allclose(loss2, ref2, atol=1e-5, rtol=1e-5), (loss2, ref2)

    # 3) bf16 logits at the boundary (kernel upcasts to f32) — halves HBM reads;
    #    also exercises the ">=2 blocks for megacore" split path.
    B3, C3 = 64, 128
    kx3, kt3 = jax.random.split(jax.random.PRNGKey(0), 2)
    x3 = jax.random.normal(kx3, (B3, C3), dtype=jnp.float32).astype(jnp.bfloat16)
    t3 = jax.random.randint(kt3, (B3,), 0, C3, dtype=jnp.int32)
    loss3 = jax.block_until_ready(label_smoothing_loss(x3, t3, classes=C3, smoothing=0.1))
    ref3 = ref_loss(x3, t3, C3, 0.1)   # reference upcasts the same bf16 values
    assert jnp.allclose(loss3, ref3, atol=1e-4, rtol=1e-4), (loss3, ref3)

    print("KERNEL_OK")
</pallas_src>

<mosaic_0001>
module attributes {stable_mosaic.version = 11 : i64} {
  func.func @_label_smoothing_kernel(%arg0: i32, %arg1: memref<8x32xf32, #tpu.memory_space<vmem>>, %arg2: memref<8x1xi32, #tpu.memory_space<vmem>>, %arg3: memref<8x1xf32, #tpu.memory_space<vmem>>) attributes {dimension_semantics = [#tpu.dimension_semantics<parallel>], iteration_bounds = array<i64: 1>, scalar_prefetch = 0 : i64, scratch_operands = 0 : i64, tpu.core_type = #tpu.core_type<tc>, window_params = [{transform_indices = @transform_0, window_bounds = array<i64: 8, 32>}, {transform_indices = @transform_1, window_bounds = array<i64: 8, 1>}, {transform_indices = @transform_2, window_bounds = array<i64: 8, 1>}]} {
    %c0 = arith.constant 0 : index
    %c0_0 = arith.constant 0 : index
    %0 = vector.load %arg1[%c0, %c0_0] : memref<8x32xf32, #tpu.memory_space<vmem>>, vector<8x32xf32>
    %c0_1 = arith.constant 0 : index
    %c0_2 = arith.constant 0 : index
    %1 = vector.load %arg2[%c0_1, %c0_2] : memref<8x1xi32, #tpu.memory_space<vmem>>, vector<8x1xi32>
    %cst = arith.constant dense<0xFF800000> : vector<8xf32>
    %2 = vector.multi_reduction <maximumf>, %0, %cst [1] : vector<8x32xf32> to vector<8xf32>
    %3 = vector.shape_cast %2 : vector<8xf32> to vector<8x1xf32>
    %cst_3 = arith.constant dense<0.000000e+00> : vector<8xf32>
    %4 = vector.multi_reduction <add>, %0, %cst_3 [1] : vector<8x32xf32> to vector<8xf32>
    %5 = vector.shape_cast %4 : vector<8xf32> to vector<8x1xf32>
    %6 = vector.broadcast %3 : vector<8x1xf32> to vector<8x32xf32>
    %7 = arith.subf %0, %6 : vector<8x32xf32>
    %8 = math.exp %7 : vector<8x32xf32>
    %cst_4 = arith.constant dense<0.000000e+00> : vector<8xf32>
    %9 = vector.multi_reduction <add>, %8, %cst_4 [1] : vector<8x32xf32> to vector<8xf32>
    %10 = vector.shape_cast %9 : vector<8xf32> to vector<8x1xf32>
    %11 = math.log %10 : vector<8x1xf32>
    %12 = tpu.iota {dimensions = array<i32: 1>} : vector<1x32xi32>
    %13 = vector.broadcast %12 : vector<1x32xi32> to vector<8x32xi32>
    %14 = vector.broadcast %1 : vector<8x1xi32> to vector<8x32xi32>
    %15 = arith.cmpi eq, %13, %14 : vector<8x32xi32>
    %cst_5 = arith.constant 0.000000e+00 : f32
    %16 = vector.broadcast %cst_5 : f32 to vector<8x32xf32>
    %17 = arith.select %15, %0, %16 : vector<8x32xi1>, vector<8x32xf32>
    %cst_6 = arith.constant dense<0.000000e+00> : vector<8xf32>
    %18 = vector.multi_reduction <add>, %17, %cst_6 [1] : vector<8x32xf32> to vector<8xf32>
    %19 = vector.shape_cast %18 : vector<8xf32> to vector<8x1xf32>
    %20 = arith.addf %3, %11 : vector<8x1xf32>
    %cst_7 = arith.constant 3.200000e+01 : f32
    %21 = vector.broadcast %cst_7 : f32 to vector<8x1xf32>
    %22 = arith.mulf %21, %20 : vector<8x1xf32>
    %23 = arith.subf %5, %22 : vector<8x1xf32>
    %24 = arith.addf %3, %11 : vector<8x1xf32>
    %25 = arith.subf %19, %24 : vector<8x1xf32>
    %cst_8 = arith.constant 0.0032258064 : f32
    %26 = vector.broadcast %cst_8 : f32 to vector<8x1xf32>
    %27 = arith.mulf %26, %23 : vector<8x1xf32>
    %cst_9 = arith.constant 0.896774172 : f32
    %28 = vector.broadcast %cst_9 : f32 to vector<8x1xf32>
    %29 = arith.mulf %28, %25 : vector<8x1xf32>
    %30 = arith.addf %27, %29 : vector<8x1xf32>
    %cst_10 = arith.constant 0.000000e+00 : f32
    %31 = vector.broadcast %cst_10 : f32 to vector<8x1xf32>
    %32 = arith.subf %31, %30 : vector<8x1xf32>
    %c0_11 = arith.constant 0 : index
    %c0_12 = arith.constant 0 : index
    %33 = vector.load %arg3[%c0_11, %c0_12] : memref<8x1xf32, #tpu.memory_space<vmem>>, vector<8x1xf32>
    tpu.vector_store %arg3[%c0_11, %c0_12], %32 {strides = array<i32>} : memref<8x1xf32, #tpu.memory_space<vmem>>, vector<8x1xf32>,
    return
  }
  func.func @transform_0(%arg0: i32) -> (i32, i32) {
    %c0_i32 = arith.constant 0 : i32
    %c0_i32_0 = arith.constant 0 : i32
    return %arg0, %c0_i32 : i32, i32
  }
  func.func @transform_1(%arg0: i32) -> (i32, i32) {
    %c0_i32 = arith.constant 0 : i32
    %c0_i32_0 = arith.constant 0 : i32
    return %arg0, %c0_i32 : i32, i32
  }
  func.func @transform_2(%arg0: i32) -> (i32, i32) {
    %c0_i32 = arith.constant 0 : i32
    %c0_i32_0 = arith.constant 0 : i32
    return %arg0, %c0_i32 : i32, i32
  }
}

</mosaic_0001>

<llo_original>
// kernel: tpu_custom_call.1
$region0: #{tpu_custom_call.1}
  #allocation0 [shape = 'u32[]', space=smem, size = 0x4, offset = 0x4, fixed_abs, tag = 'smem constant byte address 0x4 - core index']
  #allocation1 [shape = 'u32[144,128]{1,0:T(1,128)}', space=vmem, size = 0x12000, scoped, tag = 'internal scratch']
  %s0 = inlined_call_operand.vmem [shape: f32[8,32], index: 0, kind: input, shape index: {}]
  %s1 = inlined_call_operand.vmem [shape: s32[8,1], index: 1, kind: input, shape index: {}]
  %s2 = inlined_call_operand.vmem [shape: f32[8,1], index: 2, kind: output, shape index: {}]
  %s3 = sld [smem:[#allocation0]]
  $region18: #{tpu_custom_call.1} parent=0
    _
  %s5 = ssub.s32 1, %s3
  %s6 = scalar_select 0, %s5, %s3
  // Predicated region
  $region2: #{tpu_custom_call.1} parent=0 // pred_check
    _
  $region3: #{tpu_custom_call.1} parent=0 // pred_check_branch
    %8 = sbr.rel (0) target = $region5
  $region4: #{tpu_custom_call.1} parent=0 // pred_region
    _
  $region5: #{tpu_custom_call.1} parent=0 // pred_fallthru
    _
  // Predicated region
  $region6: #{tpu_custom_call.1} parent=0 // pred_check
    _
  $region7: #{tpu_custom_call.1} parent=0 // pred_check_branch
    %10 = sbr.rel (0) target = $region9
  $region8: #{tpu_custom_call.1} parent=0 // pred_region
    _
  $region9: #{tpu_custom_call.1} parent=0 // pred_fallthru
    _
  %v11 = vld [vmem:[%s0] sm:$0xff]
  %v12 = vld [vmem:[%s1] sm:$0xff]
  %vm13 = vcmask 261120
  %v14 = vsel %vm13, %v11, -inf
  %15 = vmax.xlane.f32.xlu0 %v14
  %v16 = vpop.xlane.xlu0 %15
  %v17 = vsel %vm13, %v11, 0.0
  %18 = vadd.xlane.f32.xlu0 %v17
  %v19 = vpop.xlane.xlu0 %18
  %v20 = vsub.f32 %v11, %v16
  %v21 = vmul.f32 %v20, 1.442695
  %v22 = vpow.pop %v21
  %v23 = vsel %vm13, %v22, 0.0
  %24 = vadd.xlane.f32.xlu0 %v23
  %v25 = vpop.xlane.xlu0 %24
  %v26 = vlog2.pop %v25
  %v27 = vmul.f32 %v26, 0.6931472
  %v28 = vlaneseq
  %v29 = vand.u32 %v28, 127
  %30 = vset.pattern.permute.xlu0 0
  %31 = vperm.xlu0 %30, %v12
  %v32 = vpop.permute.xlu0 %31
  %vm33 = vcmp.eq.s32.totalorder %v29, %v32
  %v34 = vsel %vm33, %v11, 0.0
  %v35 = vsel %vm13, %v34, 0.0
  %36 = vadd.xlane.f32.xlu0 %v35
  %v37 = vpop.xlane.xlu0 %36
  %v38 = vadd.f32 %v16, %v27
  %v39 = vmul.f32 %v38, 32.0
  %v40 = vsub.f32 %v19, %v39
  %v41 = vsub.f32 %v37, %v38
  %v42 = vmul.f32 %v40, 0.0032258064
  %v43 = vmul.f32 %v41, 0.8967742
  %v44 = vadd.f32 %v42, %v43
  %v45 = vsub.f32 0.0, %v44
  %vm46 = vcmask 7168
  %47 = vst.msk [vmem:[%s2] sm:$0xff] %vm46, %v45
  // Predicated region
  $region10: #{tpu_custom_call.1} parent=0 // pred_check
    _
  $region11: #{tpu_custom_call.1} parent=0 // pred_check_branch
    %49 = sbr.rel (0) target = $region13
  $region12: #{tpu_custom_call.1} parent=0 // pred_region
    _
  $region13: #{tpu_custom_call.1} parent=0 // pred_fallthru
    _
  // Predicated region
  $region14: #{tpu_custom_call.1} parent=0 // pred_check
    _
  $region15: #{tpu_custom_call.1} parent=0 // pred_check_branch
    %51 = sbr.rel (0) target = $region17
  $region16: #{tpu_custom_call.1} parent=0 // pred_region
    _
  $region17: #{tpu_custom_call.1} parent=0 // pred_fallthru
    _

</llo_original>
